<compile_context>
chip_gen: v7x
topology: tpu7x:2x2x1
jax: 0.10.0
libtpu: 0.0.40
codegen_flags: <defaults>
</compile_context>

<pallas_src>
import functools

import numpy as np

import jax
import jax.numpy as jnp
from jax.experimental import pallas as pl
from jax.experimental.pallas import tpu as pltpu


def colearner_kernel(x_ref, w1_ref, b1_ref, w2_ref, b2_ref, wf_ref, bf_ref,
                     out_ref, *, dims):
    B, C, H, W, OUT = dims
    H1 = H - 4                 # conv1 output (5x5 valid); square
    P1 = H1 - 2                # pool1 output (3x3 stride 1 valid)
    H2 = P1 - 4                # conv2 output
    P2 = H2 - 2                # pool2 output

    R0 = B * H                 # stacked input rows (batch b at rows b*H..b*H+H-1)
    R1 = R0 - 4                # rows after conv1
    R2 = R1 - 2                # rows after pool1
    R3 = R2 - 4                # rows after conv2
    R4 = R3 - 2                # rows after pool2
    R5 = R4 - (P2 - 1)         # rows after fc row-tap fusion

    x = x_ref[...]                                           # (R0, W*C)

    # ---- conv1: fuse the 5 vertical taps into K, one MXU dot ----
    a1 = jnp.concatenate([x[ky:ky + R1, :] for ky in range(5)], axis=1)  # (R1, 5*W*C)
    y1 = jnp.dot(a1, w1_ref[...],
                 preferred_element_type=jnp.float32) + b1_ref[...]       # (R1, H1*C)

    # ---- max_pool2d(3, stride=1) + relu, separable (horizontal then vertical) ----
    hm1 = jnp.maximum(jnp.maximum(y1[:, 0:P1 * C], y1[:, C:(P1 + 1) * C]),
                      y1[:, 2 * C:(P1 + 2) * C])                          # (R1, P1*C)
    p1 = jnp.maximum(
        jnp.maximum(jnp.maximum(hm1[0:R2], hm1[1:R2 + 1]), hm1[2:R2 + 2]),
        0.0)                                                              # (R2, P1*C)

    # ---- conv2: same fused-K single dot ----
    a2 = jnp.concatenate([p1[ky:ky + R3, :] for ky in range(5)], axis=1)  # (R3, 5*P1*C)
    y2 = jnp.dot(a2, w2_ref[...],
                 preferred_element_type=jnp.float32) + b2_ref[...]       # (R3, H2*C)

    hm2 = jnp.maximum(jnp.maximum(y2[:, 0:P2 * C], y2[:, C:(P2 + 1) * C]),
                      y2[:, 2 * C:(P2 + 2) * C])                          # (R3, P2*C)
    p2 = jnp.maximum(
        jnp.maximum(jnp.maximum(hm2[0:R4], hm2[1:R4 + 1]), hm2[2:R4 + 2]),
        0.0)                                                              # (R4, P2*C)

    # ---- fc1 (+ NCHW-compatible flatten): fuse the P2 row-taps into K ----
    # wf rows are ordered (h*P2 + w)*C + c, so lane-block h of af pairs with
    # row-block h of wf and reproduces x.view(B, -1) @ fc1.weight.T.
    af = jnp.concatenate([p2[h:h + R5, :] for h in range(P2)], axis=1)   # (R5, P2*P2*C)
    logits_full = jnp.dot(af, wf_ref[...],
                          preferred_element_type=jnp.float32) + bf_ref[...]  # (R5, OUT)

    # Valid logits for batch b live at stacked row b*H; gather them once.
    logits = jnp.concatenate(
        [logits_full[b * H:b * H + 1, :] for b in range(B)], axis=0)      # (B, OUT)

    # ---- softmax(dim=1), batched, exact divide, single store ----
    m = jnp.max(logits, axis=1, keepdims=True)
    e = jnp.exp(logits - m)
    probs = e / jnp.sum(e, axis=1, keepdims=True)
    out_ref[...] = probs.astype(out_ref.dtype)


def colearner_forward(x_stacked, w1, b1, w2, b2, wf, bf, *, batch, channels,
                      out_features):
    BH, WC = x_stacked.shape
    H = BH // batch
    W = WC // channels
    kernel = functools.partial(
        colearner_kernel, dims=(batch, channels, H, W, out_features))
    return pl.pallas_call(
        kernel,
        out_shape=jax.ShapeDtypeStruct((batch, out_features), jnp.float32),
        in_specs=[pl.BlockSpec(memory_space=pltpu.MemorySpace.VMEM)
                  for _ in range(7)],
        out_specs=pl.BlockSpec(memory_space=pltpu.MemorySpace.VMEM),
    )(x_stacked, w1, b1, w2, b2, wf, bf)


# ----------------------------------------------------------------------------
# Plain-JAX / numpy parameter layout glue (done once, outside the kernel).
# ----------------------------------------------------------------------------
def make_im2row_conv_weight(w_oihw, win, c):
    """OIHW (c, c, 5, 5) -> (5*win*c, (win-4)*c) Toeplitz 'im2row' matrix.

    row index = ky*win*c + w*c + ci ; col index = wo*c + co ;
    value     = w_oihw[co, ci, ky, w - wo] when 0 <= w - wo < 5 else 0.
    Lane-block ky of the fused activation (rows shifted down by ky) contracts
    against row-block ky of this matrix -> 5x5 valid convolution.
    """
    wout = win - 4
    w_np = np.asarray(w_oihw, np.float32)
    big = np.zeros((5 * win * c, wout * c), np.float32)
    for ky in range(5):
        for kx in range(5):
            tap = w_np[:, :, ky, kx].T            # (ci, co)
            for wo in range(wout):
                r0 = ky * win * c + (wo + kx) * c
                big[r0:r0 + c, wo * c:(wo + 1) * c] = tap
    return jnp.asarray(big)


def make_conv_bias(b_vec, wout):
    # bias[co] tiled over output width -> (1, wout*c) matching packed layout.
    return jnp.asarray(np.tile(np.asarray(b_vec, np.float32), wout)[None, :])


if __name__ == "__main__":
    # CoLearner(in_channels=3, out_features=8, hidden_size=(_, 4), wh_size=16)
    B, C, WH, OUT = 2, 4, 16, 8
    H1 = WH - 4          # 12 after conv1
    P1 = H1 - 2          # 10 after pool1
    H2 = P1 - 4          # 6  after conv2
    P2 = H2 - 2          # 4  after pool2
    FLAT = C * P2 * P2   # 64 == flattened_size in CoLearner.__init__

    key = jax.random.PRNGKey(0)
    ks = jax.random.split(key, 7)
    x_nchw = jax.random.normal(ks[0], (B, C, WH, WH), jnp.float32)
    # Deterministic synthetic parameters in PyTorch layouts.
    w1_pt = jax.random.normal(ks[1], (C, C, 5, 5), jnp.float32) * 0.1   # OIHW
    b1_pt = jax.random.normal(ks[2], (C,), jnp.float32) * 0.1
    w2_pt = jax.random.normal(ks[3], (C, C, 5, 5), jnp.float32) * 0.1
    b2_pt = jax.random.normal(ks[4], (C,), jnp.float32) * 0.1
    wf_pt = jax.random.normal(ks[5], (OUT, FLAT), jnp.float32) * 0.1    # (out, C*H*W)
    bf_pt = jax.random.normal(ks[6], (OUT,), jnp.float32) * 0.1

    # --- layout glue ---
    # input: NCHW -> NHWC -> (B*H, W*C) stacked packed rows (batch along M)
    x_stacked = jnp.transpose(x_nchw, (0, 2, 3, 1)).reshape(B * WH, WH * C)
    w1_k = make_im2row_conv_weight(w1_pt, WH, C)   # (5*WH*C, H1*C) = (320, 48)
    w2_k = make_im2row_conv_weight(w2_pt, P1, C)   # (5*P1*C, H2*C) = (200, 24)
    b1_k = make_conv_bias(b1_pt, H1)               # (1, 48)
    b2_k = make_conv_bias(b2_pt, H2)               # (1, 24)
    # fc: PyTorch col index c*P2*P2 + h*P2 + w  ->  rows ordered (h*P2 + w)*C + c
    wf_k = jnp.transpose(wf_pt.reshape(OUT, C, P2, P2),
                         (2, 3, 1, 0)).reshape(P2 * P2 * C, OUT)   # (64, 8)
    bf_k = bf_pt.reshape(1, OUT)

    out = colearner_forward(x_stacked, w1_k, b1_k, w2_k, b2_k, wf_k, bf_k,
                            batch=B, channels=C, out_features=OUT)
    out = jax.block_until_ready(out)

    # --- pure-JAX reference (NCHW, mirrors the PyTorch forward) ---
    def ref_forward(x):
        dn = ("NCHW", "OIHW", "NCHW")
        y = jax.lax.conv_general_dilated(x, w1_pt, (1, 1), "VALID",
                                         dimension_numbers=dn) + b1_pt[None, :, None, None]
        y = jax.lax.reduce_window(y, -jnp.inf, jax.lax.max, (1, 1, 3, 3), (1, 1, 1, 1), "VALID")
        y = jax.nn.relu(y)
        y = jax.lax.conv_general_dilated(y, w2_pt, (1, 1), "VALID",
                                         dimension_numbers=dn) + b2_pt[None, :, None, None]
        y = jax.lax.reduce_window(y, -jnp.inf, jax.lax.max, (1, 1, 3, 3), (1, 1, 1, 1), "VALID")
        y = jax.nn.relu(y)
        y = y.reshape(B, -1)
        logits = y @ wf_pt.T + bf_pt
        return jax.nn.softmax(logits, axis=1)

    ref = jax.block_until_ready(ref_forward(x_nchw))
    assert out.shape == (B, OUT)
    # Softmax now uses an exact divide; remaining differences are only default
    # MXU matmul precision vs XLA's conv lowering.
    assert jnp.allclose(out, ref, atol=1e-3, rtol=1e-3), (out, ref)
    print("KERNEL_OK")
</pallas_src>

<mosaic_0001>
module attributes {stable_mosaic.version = 11 : i64} {
  func.func @colearner_kernel(%arg0: memref<32x64xf32, #tpu.memory_space<vmem>>, %arg1: memref<320x48xf32, #tpu.memory_space<vmem>>, %arg2: memref<1x48xf32, #tpu.memory_space<vmem>>, %arg3: memref<200x24xf32, #tpu.memory_space<vmem>>, %arg4: memref<1x24xf32, #tpu.memory_space<vmem>>, %arg5: memref<64x8xf32, #tpu.memory_space<vmem>>, %arg6: memref<1x8xf32, #tpu.memory_space<vmem>>, %arg7: memref<2x8xf32, #tpu.memory_space<vmem>>) attributes {dimension_semantics = [], scalar_prefetch = 0 : i64, scratch_operands = 0 : i64, tpu.core_type = #tpu.core_type<tc>} {
    %c0 = arith.constant 0 : index
    %c0_0 = arith.constant 0 : index
    %0 = vector.load %arg0[%c0, %c0_0] : memref<32x64xf32, #tpu.memory_space<vmem>>, vector<32x64xf32>
    %1 = vector.extract_strided_slice %0 {offsets = [0, 0], sizes = [28, 64], strides = [1, 1]} : vector<32x64xf32> to vector<28x64xf32>
    %2 = vector.extract_strided_slice %0 {offsets = [1, 0], sizes = [28, 64], strides = [1, 1]} : vector<32x64xf32> to vector<28x64xf32>
    %3 = vector.extract_strided_slice %0 {offsets = [2, 0], sizes = [28, 64], strides = [1, 1]} : vector<32x64xf32> to vector<28x64xf32>
    %4 = vector.extract_strided_slice %0 {offsets = [3, 0], sizes = [28, 64], strides = [1, 1]} : vector<32x64xf32> to vector<28x64xf32>
    %5 = vector.extract_strided_slice %0 {offsets = [4, 0], sizes = [28, 64], strides = [1, 1]} : vector<32x64xf32> to vector<28x64xf32>
    %6 = tpu.concatenate %1, %2, %3, %4, %5 in 1 : vector<28x64xf32>, vector<28x64xf32>, vector<28x64xf32>, vector<28x64xf32>, vector<28x64xf32> -> vector<28x320xf32>
    %c0_1 = arith.constant 0 : index
    %c0_2 = arith.constant 0 : index
    %7 = vector.load %arg1[%c0_1, %c0_2] : memref<320x48xf32, #tpu.memory_space<vmem>>, vector<320x48xf32>
    %cst = arith.constant dense<0.000000e+00> : vector<28x48xf32>
    %8 = tpu.matmul %6, %7, %cst {dimension_numbers = #tpu.dot_dimension_numbers<[1], [0], [0], [1], [0, 0, 1, 1], [], []>} : vector<28x320xf32>, vector<320x48xf32>, vector<28x48xf32> -> vector<28x48xf32>
    %c0_3 = arith.constant 0 : index
    %c0_4 = arith.constant 0 : index
    %9 = vector.load %arg2[%c0_3, %c0_4] : memref<1x48xf32, #tpu.memory_space<vmem>>, vector<1x48xf32>
    %10 = vector.broadcast %9 : vector<1x48xf32> to vector<28x48xf32>
    %11 = arith.addf %8, %10 : vector<28x48xf32>
    %12 = vector.extract_strided_slice %11 {offsets = [0, 0], sizes = [28, 40], strides = [1, 1]} : vector<28x48xf32> to vector<28x40xf32>
    %13 = vector.extract_strided_slice %11 {offsets = [0, 4], sizes = [28, 40], strides = [1, 1]} : vector<28x48xf32> to vector<28x40xf32>
    %14 = arith.maximumf %12, %13 : vector<28x40xf32>
    %15 = vector.extract_strided_slice %11 {offsets = [0, 8], sizes = [28, 40], strides = [1, 1]} : vector<28x48xf32> to vector<28x40xf32>
    %16 = arith.maximumf %14, %15 : vector<28x40xf32>
    %17 = vector.extract_strided_slice %16 {offsets = [0, 0], sizes = [26, 40], strides = [1, 1]} : vector<28x40xf32> to vector<26x40xf32>
    %18 = vector.extract_strided_slice %16 {offsets = [1, 0], sizes = [26, 40], strides = [1, 1]} : vector<28x40xf32> to vector<26x40xf32>
    %19 = arith.maximumf %17, %18 : vector<26x40xf32>
    %20 = vector.extract_strided_slice %16 {offsets = [2, 0], sizes = [26, 40], strides = [1, 1]} : vector<28x40xf32> to vector<26x40xf32>
    %21 = arith.maximumf %19, %20 : vector<26x40xf32>
    %cst_5 = arith.constant 0.000000e+00 : f32
    %22 = vector.broadcast %cst_5 : f32 to vector<26x40xf32>
    %23 = arith.maximumf %21, %22 : vector<26x40xf32>
    %24 = vector.extract_strided_slice %23 {offsets = [0, 0], sizes = [22, 40], strides = [1, 1]} : vector<26x40xf32> to vector<22x40xf32>
    %25 = vector.extract_strided_slice %23 {offsets = [1, 0], sizes = [22, 40], strides = [1, 1]} : vector<26x40xf32> to vector<22x40xf32>
    %26 = vector.extract_strided_slice %23 {offsets = [2, 0], sizes = [22, 40], strides = [1, 1]} : vector<26x40xf32> to vector<22x40xf32>
    %27 = vector.extract_strided_slice %23 {offsets = [3, 0], sizes = [22, 40], strides = [1, 1]} : vector<26x40xf32> to vector<22x40xf32>
    %28 = vector.extract_strided_slice %23 {offsets = [4, 0], sizes = [22, 40], strides = [1, 1]} : vector<26x40xf32> to vector<22x40xf32>
    %29 = tpu.concatenate %24, %25, %26, %27, %28 in 1 : vector<22x40xf32>, vector<22x40xf32>, vector<22x40xf32>, vector<22x40xf32>, vector<22x40xf32> -> vector<22x200xf32>
    %c0_6 = arith.constant 0 : index
    %c0_7 = arith.constant 0 : index
    %30 = vector.load %arg3[%c0_6, %c0_7] : memref<200x24xf32, #tpu.memory_space<vmem>>, vector<200x24xf32>
    %cst_8 = arith.constant dense<0.000000e+00> : vector<22x24xf32>
    %31 = tpu.matmul %29, %30, %cst_8 {dimension_numbers = #tpu.dot_dimension_numbers<[1], [0], [0], [1], [0, 0, 1, 1], [], []>} : vector<22x200xf32>, vector<200x24xf32>, vector<22x24xf32> -> vector<22x24xf32>
    %c0_9 = arith.constant 0 : index
    %c0_10 = arith.constant 0 : index
    %32 = vector.load %arg4[%c0_9, %c0_10] : memref<1x24xf32, #tpu.memory_space<vmem>>, vector<1x24xf32>
    %33 = vector.broadcast %32 : vector<1x24xf32> to vector<22x24xf32>
    %34 = arith.addf %31, %33 : vector<22x24xf32>
    %35 = vector.extract_strided_slice %34 {offsets = [0, 0], sizes = [22, 16], strides = [1, 1]} : vector<22x24xf32> to vector<22x16xf32>
    %36 = vector.extract_strided_slice %34 {offsets = [0, 4], sizes = [22, 16], strides = [1, 1]} : vector<22x24xf32> to vector<22x16xf32>
    %37 = arith.maximumf %35, %36 : vector<22x16xf32>
    %38 = vector.extract_strided_slice %34 {offsets = [0, 8], sizes = [22, 16], strides = [1, 1]} : vector<22x24xf32> to vector<22x16xf32>
    %39 = arith.maximumf %37, %38 : vector<22x16xf32>
    %40 = vector.extract_strided_slice %39 {offsets = [0, 0], sizes = [20, 16], strides = [1, 1]} : vector<22x16xf32> to vector<20x16xf32>
    %41 = vector.extract_strided_slice %39 {offsets = [1, 0], sizes = [20, 16], strides = [1, 1]} : vector<22x16xf32> to vector<20x16xf32>
    %42 = arith.maximumf %40, %41 : vector<20x16xf32>
    %43 = vector.extract_strided_slice %39 {offsets = [2, 0], sizes = [20, 16], strides = [1, 1]} : vector<22x16xf32> to vector<20x16xf32>
    %44 = arith.maximumf %42, %43 : vector<20x16xf32>
    %cst_11 = arith.constant 0.000000e+00 : f32
    %45 = vector.broadcast %cst_11 : f32 to vector<20x16xf32>
    %46 = arith.maximumf %44, %45 : vector<20x16xf32>
    %47 = vector.extract_strided_slice %46 {offsets = [0, 0], sizes = [17, 16], strides = [1, 1]} : vector<20x16xf32> to vector<17x16xf32>
    %48 = vector.extract_strided_slice %46 {offsets = [1, 0], sizes = [17, 16], strides = [1, 1]} : vector<20x16xf32> to vector<17x16xf32>
    %49 = vector.extract_strided_slice %46 {offsets = [2, 0], sizes = [17, 16], strides = [1, 1]} : vector<20x16xf32> to vector<17x16xf32>
    %50 = vector.extract_strided_slice %46 {offsets = [3, 0], sizes = [17, 16], strides = [1, 1]} : vector<20x16xf32> to vector<17x16xf32>
    %51 = tpu.concatenate %47, %48, %49, %50 in 1 : vector<17x16xf32>, vector<17x16xf32>, vector<17x16xf32>, vector<17x16xf32> -> vector<17x64xf32>
    %c0_12 = arith.constant 0 : index
    %c0_13 = arith.constant 0 : index
    %52 = vector.load %arg5[%c0_12, %c0_13] : memref<64x8xf32, #tpu.memory_space<vmem>>, vector<64x8xf32>
    %cst_14 = arith.constant dense<0.000000e+00> : vector<17x8xf32>
    %53 = tpu.matmul %51, %52, %cst_14 {dimension_numbers = #tpu.dot_dimension_numbers<[1], [0], [0], [1], [0, 0, 1, 1], [], []>} : vector<17x64xf32>, vector<64x8xf32>, vector<17x8xf32> -> vector<17x8xf32>
    %c0_15 = arith.constant 0 : index
    %c0_16 = arith.constant 0 : index
    %54 = vector.load %arg6[%c0_15, %c0_16] : memref<1x8xf32, #tpu.memory_space<vmem>>, vector<1x8xf32>
    %55 = vector.broadcast %54 : vector<1x8xf32> to vector<17x8xf32>
    %56 = arith.addf %53, %55 : vector<17x8xf32>
    %57 = vector.extract_strided_slice %56 {offsets = [0, 0], sizes = [1, 8], strides = [1, 1]} : vector<17x8xf32> to vector<1x8xf32>
    %58 = vector.extract_strided_slice %56 {offsets = [16, 0], sizes = [1, 8], strides = [1, 1]} : vector<17x8xf32> to vector<1x8xf32>
    %59 = tpu.concatenate %57, %58 in 0 : vector<1x8xf32>, vector<1x8xf32> -> vector<2x8xf32>
    %cst_17 = arith.constant dense<0xFF800000> : vector<2xf32>
    %60 = vector.multi_reduction <maximumf>, %59, %cst_17 [1] : vector<2x8xf32> to vector<2xf32>
    %61 = vector.shape_cast %60 : vector<2xf32> to vector<2x1xf32>
    %62 = vector.broadcast %61 : vector<2x1xf32> to vector<2x8xf32>
    %63 = arith.subf %59, %62 : vector<2x8xf32>
    %64 = math.exp %63 : vector<2x8xf32>
    %cst_18 = arith.constant dense<0.000000e+00> : vector<2xf32>
    %65 = vector.multi_reduction <add>, %64, %cst_18 [1] : vector<2x8xf32> to vector<2xf32>
    %66 = vector.shape_cast %65 : vector<2xf32> to vector<2x1xf32>
    %67 = vector.broadcast %66 : vector<2x1xf32> to vector<2x8xf32>
    %68 = arith.divf %64, %67 : vector<2x8xf32>
    %c0_19 = arith.constant 0 : index
    %c0_20 = arith.constant 0 : index
    %69 = vector.load %arg7[%c0_19, %c0_20] : memref<2x8xf32, #tpu.memory_space<vmem>>, vector<2x8xf32>
    tpu.vector_store %arg7[%c0_19, %c0_20], %68 {strides = array<i32>} : memref<2x8xf32, #tpu.memory_space<vmem>>, vector<2x8xf32>,
    return
  }
}

</mosaic_0001>

<llo_original>
// kernel: tpu_custom_call.1
$region0: #{tpu_custom_call.1}
  #allocation0 [shape = 'u32[]', space=smem, size = 0x4, offset = 0x4, fixed_abs, tag = 'smem constant byte address 0x4 - core index']
  #allocation1 [shape = 'u32[144,128]{1,0:T(1,128)}', space=vmem, size = 0x12000, scoped, tag = 'internal scratch']
  %s0 = inlined_call_operand.vmem [shape: f32[32,64], index: 0, kind: input, shape index: {}]
  %s1 = inlined_call_operand.vmem [shape: f32[320,48], index: 1, kind: input, shape index: {}]
  %s2 = inlined_call_operand.vmem [shape: f32[1,48], index: 2, kind: input, shape index: {}]
  %s3 = inlined_call_operand.vmem [shape: f32[200,24], index: 3, kind: input, shape index: {}]
  %s4 = inlined_call_operand.vmem [shape: f32[1,24], index: 4, kind: input, shape index: {}]
  %s5 = inlined_call_operand.vmem [shape: f32[64,8], index: 5, kind: input, shape index: {}]
  %s6 = inlined_call_operand.vmem [shape: f32[1,8], index: 6, kind: input, shape index: {}]
  %s7 = inlined_call_operand.hbm [shape: f32[2,8], index: 7, kind: output, shape index: {}]
  %s8 = sld [smem:[#allocation0]]
  $region38: #{tpu_custom_call.1} parent=0
    _
  %s10 = ssub.s32 1, %s8
  %s11 = scalar_select 0, %s10, %s8
  $region1: #{tpu_custom_call.1} parent=0
    #allocation2 [shape = 'u8[1024]{0}', space=vmem, size = 0x400, scoped, tag = 'output window, operand 0, single buffered']
    #allocation3 [shape = 's32[1]{0}', space=sflag, size = 0x4, scoped, tag = 'scoped memory for tpu_custom_call.1']
    %12 = vsyncpa [#allocation3], 0
    // Predicated region
    $region2: #{tpu_custom_call.1} parent=1 // pred_check
      _
    $region3: #{tpu_custom_call.1} parent=1 // pred_check_branch
      %14 = sbr.rel (0) target = $region5
    $region4: #{tpu_custom_call.1} parent=1 // pred_region
      _
    $region5: #{tpu_custom_call.1} parent=1 // pred_fallthru
      _
    // Predicated region
    $region6: #{tpu_custom_call.1} parent=1 // pred_check
      _
    $region7: #{tpu_custom_call.1} parent=1 // pred_check_branch
      %16 = sbr.rel (0) target = $region9
    $region8: #{tpu_custom_call.1} parent=1 // pred_region
      _
    $region9: #{tpu_custom_call.1} parent=1 // pred_fallthru
      _
    // Predicated region
    $region10: #{tpu_custom_call.1} parent=1 // pred_check
      _
    $region11: #{tpu_custom_call.1} parent=1 // pred_check_branch
      %18 = sbr.rel (0) target = $region13
    $region12: #{tpu_custom_call.1} parent=1 // pred_region
      _
    $region13: #{tpu_custom_call.1} parent=1 // pred_fallthru
      _
    // Predicated region
    $region14: #{tpu_custom_call.1} parent=1 // pred_check
      _
    $region15: #{tpu_custom_call.1} parent=1 // pred_check_branch
      %20 = sbr.rel (0) target = $region17
    $region16: #{tpu_custom_call.1} parent=1 // pred_region
      _
    $region17: #{tpu_custom_call.1} parent=1 // pred_fallthru
      _
    // Predicated region
    $region18: #{tpu_custom_call.1} parent=1 // pred_check
      _
    $region19: #{tpu_custom_call.1} parent=1 // pred_check_branch
      %22 = sbr.rel (0) target = $region21
    $region20: #{tpu_custom_call.1} parent=1 // pred_region
      _
    $region21: #{tpu_custom_call.1} parent=1 // pred_fallthru
      _
    // Predicated region
    $region22: #{tpu_custom_call.1} parent=1 // pred_check
      _
    $region23: #{tpu_custom_call.1} parent=1 // pred_check_branch
      %24 = sbr.rel (0) target = $region25
    $region24: #{tpu_custom_call.1} parent=1 // pred_region
      _
    $region25: #{tpu_custom_call.1} parent=1 // pred_fallthru
      _
    // Predicated region
    $region26: #{tpu_custom_call.1} parent=1 // pred_check
      _
    $region27: #{tpu_custom_call.1} parent=1 // pred_check_branch
      %26 = sbr.rel (0) target = $region29
    $region28: #{tpu_custom_call.1} parent=1 // pred_region
      _
    $region29: #{tpu_custom_call.1} parent=1 // pred_fallthru
      _
    %v27 = vld [vmem:[%s0] sm:$0xff]
    %v28 = vld [vmem:[%s0 + $0x8] sm:$0xff]
    %v29 = vld [vmem:[%s0 + $0x10] sm:$0xff]
    %v30 = vld [vmem:[%s0 + $0x18] sm:$0xff]
    %vm35 = vcmask 1046528
    %v36 = vrot.slane %v27, 1
    %v37 = vrot.slane %v28, 1
    %v38 = vsel %vm35, %v36, %v37
    %v39 = vrot.slane %v29, 1
    %v40 = vsel %vm35, %v37, %v39
    %v41 = vrot.slane %v30, 1
    %v42 = vsel %vm35, %v39, %v41
    %43 = vrot.lane.b32.xlu0 %v38, 64
    %v44 = vpop.permute.xlu0 %43
    %45 = vrot.lane.b32.xlu0 %v40, 64
    %v46 = vpop.permute.xlu0 %45
    %47 = vrot.lane.b32.xlu0 %v42, 64
    %v48 = vpop.permute.xlu0 %47
    %49 = vrot.lane.b32.xlu0 %v41, 64
    %v50 = vpop.permute.xlu0 %49
    %vm55 = vcmask 1045504
    %v56 = vrot.slane %v27, 2
    %v57 = vrot.slane %v28, 2
    %v58 = vsel %vm55, %v56, %v57
    %v59 = vrot.slane %v29, 2
    %v60 = vsel %vm55, %v57, %v59
    %v61 = vrot.slane %v30, 2
    %v62 = vsel %vm55, %v59, %v61
    %vm67 = vcmask 1044480
    %v68 = vrot.slane %v27, 3
    %v69 = vrot.slane %v28, 3
    %v70 = vsel %vm67, %v68, %v69
    %v71 = vrot.slane %v29, 3
    %v72 = vsel %vm67, %v69, %v71
    %v73 = vrot.slane %v30, 3
    %v74 = vsel %vm67, %v71, %v73
    %75 = vrot.lane.b32.xlu0 %v70, 64
    %v76 = vpop.permute.xlu0 %75
    %77 = vrot.lane.b32.xlu0 %v72, 64
    %v78 = vpop.permute.xlu0 %77
    %79 = vrot.lane.b32.xlu0 %v74, 64
    %v80 = vpop.permute.xlu0 %79
    %81 = vrot.lane.b32.xlu0 %v73, 64
    %v82 = vpop.permute.xlu0 %81
    %vm87 = vcmask 1043456
    %v88 = vrot.slane %v27, 4
    %v89 = vrot.slane %v28, 4
    %v90 = vsel %vm87, %v88, %v89
    %v91 = vrot.slane %v29, 4
    %v92 = vsel %vm87, %v89, %v91
    %v93 = vrot.slane %v30, 4
    %v94 = vsel %vm87, %v91, %v93
    %vm95 = vcmask 523264
    %v96 = vsel %vm95, %v27, %v44
    %v97 = vsel %vm95, %v28, %v46
    %v98 = vsel %vm95, %v29, %v48
    %v99 = vsel %vm95, %v30, %v50
    %v100 = vsel %vm95, %v58, %v76
    %v101 = vsel %vm95, %v60, %v78
    %v102 = vsel %vm95, %v62, %v80
    %v103 = vsel %vm95, %v61, %v82
    %v104 = vld [vmem:[%s1] sm:$0xff]
    %v105 = vld [vmem:[%s1 + $0x8] sm:$0xff]
    %v106 = vld [vmem:[%s1 + $0x10] sm:$0xff]
    %v107 = vld [vmem:[%s1 + $0x18] sm:$0xff]
    %v108 = vld [vmem:[%s1 + $0x20] sm:$0xff]
    %v109 = vld [vmem:[%s1 + $0x28] sm:$0xff]
    %v110 = vld [vmem:[%s1 + $0x30] sm:$0xff]
    %v111 = vld [vmem:[%s1 + $0x38] sm:$0xff]
    %v112 = vld [vmem:[%s1 + $0x40] sm:$0xff]
    %v113 = vld [vmem:[%s1 + $0x48] sm:$0xff]
    %v114 = vld [vmem:[%s1 + $0x50] sm:$0xff]
    %v115 = vld [vmem:[%s1 + $0x58] sm:$0xff]
    %v116 = vld [vmem:[%s1 + $0x60] sm:$0xff]
    %v117 = vld [vmem:[%s1 + $0x68] sm:$0xff]
    %v118 = vld [vmem:[%s1 + $0x70] sm:$0xff]
    %v119 = vld [vmem:[%s1 + $0x78] sm:$0xff]
    %v120 = vld [vmem:[%s1 + $0x80] sm:$0xff]
    %v121 = vld [vmem:[%s1 + $0x88] sm:$0xff]
    %v122 = vld [vmem:[%s1 + $0x90] sm:$0xff]
    %v123 = vld [vmem:[%s1 + $0x98] sm:$0xff]
    %v124 = vld [vmem:[%s1 + $0xa0] sm:$0xff]
    %v125 = vld [vmem:[%s1 + $0xa8] sm:$0xff]
    %v126 = vld [vmem:[%s1 + $0xb0] sm:$0xff]
    %v127 = vld [vmem:[%s1 + $0xb8] sm:$0xff]
    %v128 = vld [vmem:[%s1 + $0xc0] sm:$0xff]
    %v129 = vld [vmem:[%s1 + $0xc8] sm:$0xff]
    %v130 = vld [vmem:[%s1 + $0xd0] sm:$0xff]
    %v131 = vld [vmem:[%s1 + $0xd8] sm:$0xff]
    %v132 = vld [vmem:[%s1 + $0xe0] sm:$0xff]
    %v133 = vld [vmem:[%s1 + $0xe8] sm:$0xff]
    %v134 = vld [vmem:[%s1 + $0xf0] sm:$0xff]
    %v135 = vld [vmem:[%s1 + $0xf8] sm:$0xff]
    %v136 = vld [vmem:[%s1 + $0x100] sm:$0xff]
    %v137 = vld [vmem:[%s1 + $0x108] sm:$0xff]
    %v138 = vld [vmem:[%s1 + $0x110] sm:$0xff]
    %v139 = vld [vmem:[%s1 + $0x118] sm:$0xff]
    %v140 = vld [vmem:[%s1 + $0x120] sm:$0xff]
    %v141 = vld [vmem:[%s1 + $0x128] sm:$0xff]
    %v142 = vld [vmem:[%s1 + $0x130] sm:$0xff]
    %v143 = vld [vmem:[%s1 + $0x138] sm:$0xff]
    %v144 = vld [vmem:[%s2] sm:$0x1]
    %v146 = vlaneseq
    %v147 = vshrl.u32 %v146, 7
    %v148 = vsub.s32 0, %v147
    %v149 = vrot.slane %v144, %v148
    %v151 = vsel %vm95, %v90, 0
    %v153 = vsel %vm95, %v92, 0
    %v155 = vsel %vm95, %v94, 0
    %v157 = vsel %vm95, %v93, 0
    %159 = vmatprep.subr.mxu0 0.0
    %160 = vmatpush1.msra.mxu0 %v104
    %161 = vmatprep.subr.mxu0 0.0
    %162 = vmatpush1.msra.mxu0 %v105
    %163 = vmatprep.subr.mxu0 0.0
    %164 = vmatpush1.msra.mxu0 %v106
    %165 = vmatprep.subr.mxu0 0.0
    %166 = vmatpush1.msra.mxu0 %v107
    %167 = vmatprep.subr.mxu0 0.0
    %168 = vmatpush1.msra.mxu0 %v108
    %169 = vmatprep.subr.mxu0 0.0
    %170 = vmatpush1.msra.mxu0 %v109
    %171 = vmatprep.subr.mxu0 0.0
    %172 = vmatpush1.msra.mxu0 %v110
    %173 = vmatprep.subr.mxu0 0.0
    %174 = vmatpush1.msra.mxu0 %v111
    %175 = vmatprep.subr.mxu0 0.0
    %176 = vmatpush1.msra.mxu0 %v112
    %177 = vmatprep.subr.mxu0 0.0
    %178 = vmatpush1.msra.mxu0 %v113
    %179 = vmatprep.subr.mxu0 0.0
    %180 = vmatpush1.msra.mxu0 %v114
    %181 = vmatprep.subr.mxu0 0.0
    %182 = vmatpush1.msra.mxu0 %v115
    %183 = vmatprep.subr.mxu0 0.0
    %184 = vmatpush1.msra.mxu0 %v116
    %185 = vmatprep.subr.mxu0 0.0
    %186 = vmatpush1.msra.mxu0 %v117
    %187 = vmatprep.subr.mxu0 0.0
    %188 = vmatpush1.msra.mxu0 %v118
    %189 = vmatprep.subr.mxu0 0.0
    %190 = vmatpush1.msra.mxu0 %v119
    %191 = vmatprep.subr.mxu0 0.0
    %192 = vmatpush1.msra.mxu0 %v120
    %193 = vmatprep.subr.mxu0 0.0
    %194 = vmatpush1.msra.mxu0 %v121
    %195 = vmatprep.subr.mxu0 0.0
    %196 = vmatpush1.msra.mxu0 %v122
    %197 = vmatprep.subr.mxu0 0.0
    %198 = vmatpush1.msra.mxu0 %v123
    %199 = vmatprep.subr.mxu0 0.0
    %200 = vmatpush1.msra.mxu0 %v124
    %201 = vmatprep.subr.mxu0 0.0
    %202 = vmatpush1.msra.mxu0 %v125
    %203 = vmatprep.subr.mxu0 0.0
    %204 = vmatpush1.msra.mxu0 %v126
    %205 = vmatprep.subr.mxu0 0.0
    %206 = vmatpush1.msra.mxu0 %v127
    %207 = vmatprep.subr.mxu0 0.0
    %208 = vmatpush1.msra.mxu0 %v128
    %209 = vmatprep.subr.mxu0 0.0
    %210 = vmatpush1.msra.mxu0 %v129
    %211 = vmatprep.subr.mxu0 0.0
    %212 = vmatpush1.msra.mxu0 %v130
    %213 = vmatprep.subr.mxu0 0.0
    %214 = vmatpush1.msra.mxu0 %v131
    %215 = vmatprep.subr.mxu0 0.0
    %216 = vmatpush1.msra.mxu0 %v132
    %217 = vmatprep.subr.mxu0 0.0
    %218 = vmatpush1.msra.mxu0 %v133
    %219 = vmatprep.subr.mxu0 0.0
    %220 = vmatpush1.msra.mxu0 %v134
    %221 = vmatprep.subr.mxu0 0.0
    %222 = vmatpush1.msra.mxu0 %v135
    %223 = vmatprep.mubr.f32.mxu0 %v100
    %224 = vmatmul.mubr.f32.gmra.mrb[0].mxu0 %v96
    %v225 = vpop.f32.mrb[0].mxu0
    %v226 = vadd.f32 %v149, %v225
    %v227 = vpop.f32.mrb[0].mxu0
    %228 = vmatprep.mubr.f32.mxu0 %v101
    %229 = vmatmul.mubr.f32.gmra.mrb[0].mxu0 %v97
    %v230 = vpop.f32.mrb[0].mxu0
    %v231 = vadd.f32 %v149, %v230
    %v232 = vpop.f32.mrb[0].mxu0
    %233 = vmatprep.mubr.f32.mxu0 %v102
    %234 = vmatmul.mubr.f32.gmra.mrb[0].mxu0 %v98
    %v235 = vpop.f32.mrb[0].mxu0
    %v236 = vadd.f32 %v149, %v235
    %v237 = vpop.f32.mrb[0].mxu0
    %238 = vmatprep.mubr.f32.mxu0 %v103
    %239 = vmatmul.mubr.f32.gmra.mrb[0].mxu0 %v99
    %v240 = vpop.f32.mrb[0].mxu0
    %v241 = vadd.f32 %v149, %v240
    %v242 = vpop.f32.mrb[0].mxu0
    %243 = vdwg.mxu0
    %244 = vmatprep.subr.mxu0 0.0
    %245 = vmatpush1.msra.mxu0 %v136
    %246 = vmatprep.subr.mxu0 0.0
    %247 = vmatpush1.msra.mxu0 %v137
    %248 = vmatprep.subr.mxu0 0.0
    %249 = vmatpush1.msra.mxu0 %v138
    %250 = vmatprep.subr.mxu0 0.0
    %251 = vmatpush1.msra.mxu0 %v139
    %252 = vmatprep.subr.mxu0 0.0
    %253 = vmatpush1.msra.mxu0 %v140
    %254 = vmatprep.subr.mxu0 0.0
    %255 = vmatpush1.msra.mxu0 %v141
    %256 = vmatprep.subr.mxu0 0.0
    %257 = vmatpush1.msra.mxu0 %v142
    %258 = vmatprep.subr.mxu0 0.0
    %259 = vmatpush1.msra.mxu0 %v143
    %260 = vmatprep.subr.mxu0 0.0
    %261 = vmatpush1.msra.mxu0 0.0
    %262 = vmatprep.subr.mxu0 0.0
    %263 = vmatpush1.msra.mxu0 0.0
    %264 = vmatprep.subr.mxu0 0.0
    %265 = vmatpush1.msra.mxu0 0.0
    %266 = vmatprep.subr.mxu0 0.0
    %267 = vmatpush1.msra.mxu0 0.0
    %268 = vmatprep.subr.mxu0 0.0
    %269 = vmatpush1.msra.mxu0 0.0
    %270 = vmatprep.subr.mxu0 0.0
    %271 = vmatpush1.msra.mxu0 0.0
    %272 = vmatprep.subr.mxu0 0.0
    %273 = vmatpush1.msra.mxu0 0.0
    %274 = vmatprep.subr.mxu0 0.0
    %275 = vmatpush1.msra.mxu0 0.0
    %276 = vmatprep.subr.mxu0 0.0
    %277 = vmatpush1.msra.mxu0 0.0
    %278 = vmatprep.subr.mxu0 0.0
    %279 = vmatpush1.msra.mxu0 0.0
    %280 = vmatprep.subr.mxu0 0.0
    %281 = vmatpush1.msra.mxu0 0.0
    %282 = vmatprep.subr.mxu0 0.0
    %283 = vmatpush1.msra.mxu0 0.0
    %284 = vmatprep.subr.mxu0 0.0
    %285 = vmatpush1.msra.mxu0 0.0
    %286 = vmatprep.subr.mxu0 0.0
    %287 = vmatpush1.msra.mxu0 0.0
    %288 = vmatprep.subr.mxu0 0.0
    %289 = vmatpush1.msra.mxu0 0.0
    %290 = vmatprep.subr.mxu0 0.0
    %291 = vmatpush1.msra.mxu0 0.0
    %292 = vmatprep.subr.mxu0 0.0
    %293 = vmatpush1.msra.mxu0 0.0
    %294 = vmatprep.subr.mxu0 0.0
    %295 = vmatpush1.msra.mxu0 0.0
    %296 = vmatprep.subr.mxu0 0.0
    %297 = vmatpush1.msra.mxu0 0.0
    %298 = vmatprep.subr.mxu0 0.0
    %299 = vmatpush1.msra.mxu0 0.0
    %300 = vmatprep.subr.mxu0 0.0
    %301 = vmatpush1.msra.mxu0 0.0
    %302 = vmatprep.subr.mxu0 0.0
    %303 = vmatpush1.msra.mxu0 0.0
    %304 = vmatprep.subr.mxu0 0.0
    %305 = vmatpush1.msra.mxu0 0.0
    %306 = vmatprep.subr.mxu0 0.0
    %307 = vmatpush1.msra.mxu0 0.0
    %308 = vmatprep.mubr.f32.mxu0 0.0
    %309 = vmatmul.mubr.f32.gmra.mrb[0].mxu0 %v151
    %v310 = vpop.f32.mrb[0].mxu0
    %v311 = vadd.f32 %v226, %v310
    %v312 = vpop.f32.mrb[0].mxu0
    %313 = vmatprep.mubr.f32.mxu0 0.0
    %314 = vmatmul.mubr.f32.gmra.mrb[0].mxu0 %v153
    %v315 = vpop.f32.mrb[0].mxu0
    %v316 = vadd.f32 %v231, %v315
    %v317 = vpop.f32.mrb[0].mxu0
    %318 = vmatprep.mubr.f32.mxu0 0.0
    %319 = vmatmul.mubr.f32.gmra.mrb[0].mxu0 %v155
    %v320 = vpop.f32.mrb[0].mxu0
    %v321 = vadd.f32 %v236, %v320
    %v322 = vpop.f32.mrb[0].mxu0
    %323 = vmatprep.mubr.f32.mxu0 0.0
    %324 = vmatmul.mubr.f32.gmra.mrb[0].mxu0 %v157
    %v325 = vpop.f32.mrb[0].mxu0
    %v326 = vadd.f32 %v241, %v325
    %v327 = vpop.f32.mrb[0].mxu0
    %328 = vdwg.mxu0
    %333 = vrot.lane.b32.xlu0 %v311, 124
    %v334 = vpop.permute.xlu0 %333
    %335 = vrot.lane.b32.xlu0 %v316, 124
    %v336 = vpop.permute.xlu0 %335
    %337 = vrot.lane.b32.xlu0 %v321, 124
    %v338 = vpop.permute.xlu0 %337
    %339 = vrot.lane.b32.xlu0 %v326, 124
    %v340 = vpop.permute.xlu0 %339
    %v345 = vmax.f32 %v311, %v334
    %v346 = vmax.f32 %v316, %v336
    %v347 = vmax.f32 %v321, %v338
    %v348 = vmax.f32 %v326, %v340
    %349 = vrot.lane.b32.xlu0 %v311, 120
    %v350 = vpop.permute.xlu0 %349
    %351 = vrot.lane.b32.xlu0 %v316, 120
    %v352 = vpop.permute.xlu0 %351
    %353 = vrot.lane.b32.xlu0 %v321, 120
    %v354 = vpop.permute.xlu0 %353
    %355 = vrot.lane.b32.xlu0 %v326, 120
    %v356 = vpop.permute.xlu0 %355
    %v361 = vmax.f32 %v345, %v350
    %v362 = vmax.f32 %v346, %v352
    %v363 = vmax.f32 %v347, %v354
    %v364 = vmax.f32 %v348, %v356
    %v369 = vrot.slane %v361, 1
    %v370 = vrot.slane %v362, 1
    %v371 = vsel %vm35, %v369, %v370
    %v372 = vrot.slane %v363, 1
    %v373 = vsel %vm35, %v370, %v372
    %v374 = vrot.slane %v364, 1
    %v375 = vsel %vm35, %v372, %v374
    %v380 = vmax.f32 %v361, %v371
    %v381 = vmax.f32 %v362, %v373
    %v382 = vmax.f32 %v363, %v375
    %v383 = vmax.f32 %v364, %v374
    %v384 = vrot.slane %v361, 2
    %v385 = vrot.slane %v362, 2
    %v386 = vsel %vm55, %v384, %v385
    %v387 = vrot.slane %v363, 2
    %v388 = vsel %vm55, %v385, %v387
    %v389 = vrot.slane %v364, 2
    %v390 = vsel %vm55, %v387, %v389
    %v395 = vmax.f32 %v380, %v386
    %v396 = vmax.f32 %v381, %v388
    %v397 = vmax.f32 %v382, %v390
    %v398 = vmax.f32 %v383, %v389
    %v399 = vmax.f32 %v395, 0.0
    %v400 = vmax.f32 %v396, 0.0
    %v401 = vmax.f32 %v397, 0.0
    %v402 = vmax.f32 %v398, 0.0
    %v406 = vrot.slane %v399, 1
    %v407 = vrot.slane %v400, 1
    %v408 = vsel %vm35, %v406, %v407
    %v409 = vrot.slane %v401, 1
    %v410 = vsel %vm35, %v407, %v409
    %411 = vrot.lane.b32.xlu0 %v408, 40
    %v412 = vpop.permute.xlu0 %411
    %413 = vrot.lane.b32.xlu0 %v410, 40
    %v414 = vpop.permute.xlu0 %413
    %415 = vrot.lane.b32.xlu0 %v409, 40
    %v416 = vpop.permute.xlu0 %415
    %v420 = vrot.slane %v399, 2
    %v421 = vrot.slane %v400, 2
    %v422 = vsel %vm55, %v420, %v421
    %v423 = vrot.slane %v401, 2
    %v424 = vsel %vm55, %v421, %v423
    %425 = vrot.lane.b32.xlu0 %v422, 80
    %v426 = vpop.permute.xlu0 %425
    %427 = vrot.lane.b32.xlu0 %v424, 80
    %v428 = vpop.permute.xlu0 %427
    %429 = vrot.lane.b32.xlu0 %v423, 80
    %v430 = vpop.permute.xlu0 %429
    %v435 = vrot.slane %v399, 3
    %v436 = vrot.slane %v400, 3
    %v437 = vsel %vm67, %v435, %v436
    %v438 = vrot.slane %v401, 3
    %v439 = vsel %vm67, %v436, %v438
    %v440 = vrot.slane %v402, 3
    %v441 = vsel %vm67, %v438, %v440
    %442 = vrot.lane.b32.xlu0 %v437, 120
    %v443 = vpop.permute.xlu0 %442
    %444 = vrot.lane.b32.xlu0 %v439, 120
    %v445 = vpop.permute.xlu0 %444
    %446 = vrot.lane.b32.xlu0 %v441, 120
    %v447 = vpop.permute.xlu0 %446
    %v451 = vrot.slane %v399, 4
    %v452 = vrot.slane %v400, 4
    %v453 = vsel %vm87, %v451, %v452
    %v454 = vrot.slane %v401, 4
    %v455 = vsel %vm87, %v452, %v454
    %v456 = vrot.slane %v402, 4
    %v457 = vsel %vm87, %v454, %v456
    %458 = vrot.lane.b32.xlu0 %v453, 32
    %v459 = vpop.permute.xlu0 %458
    %460 = vrot.lane.b32.xlu0 %v455, 32
    %v461 = vpop.permute.xlu0 %460
    %462 = vrot.lane.b32.xlu0 %v457, 32
    %v463 = vpop.permute.xlu0 %462
    %vm467 = vcmask 326656
    %v468 = vsel %vm467, %v399, %v412
    %v469 = vsel %vm467, %v400, %v414
    %v470 = vsel %vm467, %v401, %v416
    %vm471 = vcmask 654336
    %v472 = vsel %vm471, %v468, %v426
    %v473 = vsel %vm471, %v469, %v428
    %v474 = vsel %vm471, %v470, %v430
    %vm475 = vcmask 982016
    %v476 = vsel %vm475, %v472, %v443
    %v477 = vsel %vm475, %v473, %v445
    %v478 = vsel %vm475, %v474, %v447
    %vm479 = vcmask 261120
    %v480 = vsel %vm479, %v443, %v459
    %v481 = vsel %vm479, %v445, %v461
    %v482 = vsel %vm479, %v447, %v463
    %v483 = vld [vmem:[%s3] sm:$0xff]
    %v484 = vld [vmem:[%s3 + $0x8] sm:$0xff]
    %v485 = vld [vmem:[%s3 + $0x10] sm:$0xff]
    %v486 = vld [vmem:[%s3 + $0x18] sm:$0xff]
    %v487 = vld [vmem:[%s3 + $0x20] sm:$0xff]
    %v488 = vld [vmem:[%s3 + $0x28] sm:$0xff]
    %v489 = vld [vmem:[%s3 + $0x30] sm:$0xff]
    %v490 = vld [vmem:[%s3 + $0x38] sm:$0xff]
    %v491 = vld [vmem:[%s3 + $0x40] sm:$0xff]
    %v492 = vld [vmem:[%s3 + $0x48] sm:$0xff]
    %v493 = vld [vmem:[%s3 + $0x50] sm:$0xff]
    %v494 = vld [vmem:[%s3 + $0x58] sm:$0xff]
    %v495 = vld [vmem:[%s3 + $0x60] sm:$0xff]
    %v496 = vld [vmem:[%s3 + $0x68] sm:$0xff]
    %v497 = vld [vmem:[%s3 + $0x70] sm:$0xff]
    %v498 = vld [vmem:[%s3 + $0x78] sm:$0xff]
    %v499 = vld [vmem:[%s3 + $0x80] sm:$0xff]
    %v500 = vld [vmem:[%s3 + $0x88] sm:$0xff]
    %v501 = vld [vmem:[%s3 + $0x90] sm:$0xff]
    %v502 = vld [vmem:[%s3 + $0x98] sm:$0xff]
    %v503 = vld [vmem:[%s3 + $0xa0] sm:$0xff]
    %v504 = vld [vmem:[%s3 + $0xa8] sm:$0xff]
    %v505 = vld [vmem:[%s3 + $0xb0] sm:$0xff]
    %v506 = vld [vmem:[%s3 + $0xb8] sm:$0xff]
    %v507 = vld [vmem:[%s3 + $0xc0] sm:$0xff]
    %v508 = vld [vmem:[%s4] sm:$0x1]
    %v510 = vlaneseq
    %v511 = vshrl.u32 %v510, 7
    %v512 = vsub.s32 0, %v511
    %v513 = vrot.slane %v508, %v512
    %vm515 = vcmask 588800
    %v517 = vsel %vm515, %v480, 0
    %v520 = vsel %vm515, %v481, 0
    %v523 = vsel %vm515, %v482, 0
    %525 = vmatprep.subr.mxu0 0.0
    %526 = vmatpush1.msra.mxu0 %v483
    %527 = vmatprep.subr.mxu0 0.0
    %528 = vmatpush1.msra.mxu0 %v484
    %529 = vmatprep.subr.mxu0 0.0
    %530 = vmatpush1.msra.mxu0 %v485
    %531 = vmatprep.subr.mxu0 0.0
    %532 = vmatpush1.msra.mxu0 %v486
    %533 = vmatprep.subr.mxu0 0.0
    %534 = vmatpush1.msra.mxu0 %v487
    %535 = vmatprep.subr.mxu0 0.0
    %536 = vmatpush1.msra.mxu0 %v488
    %537 = vmatprep.subr.mxu0 0.0
    %538 = vmatpush1.msra.mxu0 %v489
    %539 = vmatprep.subr.mxu0 0.0
    %540 = vmatpush1.msra.mxu0 %v490
    %541 = vmatprep.subr.mxu0 0.0
    %542 = vmatpush1.msra.mxu0 %v491
    %543 = vmatprep.subr.mxu0 0.0
    %544 = vmatpush1.msra.mxu0 %v492
    %545 = vmatprep.subr.mxu0 0.0
    %546 = vmatpush1.msra.mxu0 %v493
    %547 = vmatprep.subr.mxu0 0.0
    %548 = vmatpush1.msra.mxu0 %v494
    %549 = vmatprep.subr.mxu0 0.0
    %550 = vmatpush1.msra.mxu0 %v495
    %551 = vmatprep.subr.mxu0 0.0
    %552 = vmatpush1.msra.mxu0 %v496
    %553 = vmatprep.subr.mxu0 0.0
    %554 = vmatpush1.msra.mxu0 %v497
    %555 = vmatprep.subr.mxu0 0.0
    %556 = vmatpush1.msra.mxu0 %v498
    %557 = vmatprep.subr.mxu0 0.0
    %558 = vmatpush1.msra.mxu0 %v499
    %559 = vmatprep.subr.mxu0 0.0
    %560 = vmatpush1.msra.mxu0 %v500
    %561 = vmatprep.subr.mxu0 0.0
    %562 = vmatpush1.msra.mxu0 %v501
    %563 = vmatprep.subr.mxu0 0.0
    %564 = vmatpush1.msra.mxu0 %v502
    %565 = vmatprep.subr.mxu0 0.0
    %566 = vmatpush1.msra.mxu0 %v503
    %567 = vmatprep.subr.mxu0 0.0
    %568 = vmatpush1.msra.mxu0 %v504
    %569 = vmatprep.subr.mxu0 0.0
    %570 = vmatpush1.msra.mxu0 %v505
    %571 = vmatprep.subr.mxu0 0.0
    %572 = vmatpush1.msra.mxu0 %v506
    %573 = vmatprep.subr.mxu0 0.0
    %574 = vmatpush1.msra.mxu0 %v507
    %575 = vmatprep.subr.mxu0 0.0
    %576 = vmatpush1.msra.mxu0 0.0
    %577 = vmatprep.subr.mxu0 0.0
    %578 = vmatpush1.msra.mxu0 0.0
    %579 = vmatprep.subr.mxu0 0.0
    %580 = vmatpush1.msra.mxu0 0.0
    %581 = vmatprep.subr.mxu0 0.0
    %582 = vmatpush1.msra.mxu0 0.0
    %583 = vmatprep.subr.mxu0 0.0
    %584 = vmatpush1.msra.mxu0 0.0
    %585 = vmatprep.subr.mxu0 0.0
    %586 = vmatpush1.msra.mxu0 0.0
    %587 = vmatprep.subr.mxu0 0.0
    %588 = vmatpush1.msra.mxu0 0.0
    %589 = vmatprep.mubr.f32.mxu0 %v517
    %590 = vmatmul.mubr.f32.gmra.mrb[0].mxu0 %v476
    %v591 = vpop.f32.mrb[0].mxu0
    %v592 = vadd.f32 %v513, %v591
    %v593 = vpop.f32.mrb[0].mxu0
    %594 = vmatprep.mubr.f32.mxu0 %v520
    %595 = vmatmul.mubr.f32.gmra.mrb[0].mxu0 %v477
    %v596 = vpop.f32.mrb[0].mxu0
    %v597 = vadd.f32 %v513, %v596
    %v598 = vpop.f32.mrb[0].mxu0
    %599 = vmatprep.mubr.f32.mxu0 %v523
    %600 = vmatmul.mubr.f32.gmra.mrb[0].mxu0 %v478
    %v601 = vpop.f32.mrb[0].mxu0
    %v602 = vadd.f32 %v513, %v601
    %v603 = vpop.f32.mrb[0].mxu0
    %604 = vdwg.mxu0
    %608 = vrot.lane.b32.xlu0 %v592, 124
    %v609 = vpop.permute.xlu0 %608
    %610 = vrot.lane.b32.xlu0 %v597, 124
    %v611 = vpop.permute.xlu0 %610
    %612 = vrot.lane.b32.xlu0 %v602, 124
    %v613 = vpop.permute.xlu0 %612
    %v617 = vmax.f32 %v592, %v609
    %v618 = vmax.f32 %v597, %v611
    %v619 = vmax.f32 %v602, %v613
    %620 = vrot.lane.b32.xlu0 %v592, 120
    %v621 = vpop.permute.xlu0 %620
    %622 = vrot.lane.b32.xlu0 %v597, 120
    %v623 = vpop.permute.xlu0 %622
    %624 = vrot.lane.b32.xlu0 %v602, 120
    %v625 = vpop.permute.xlu0 %624
    %v629 = vmax.f32 %v617, %v621
    %v630 = vmax.f32 %v618, %v623
    %v631 = vmax.f32 %v619, %v625
    %v635 = vrot.slane %v629, 1
    %v636 = vrot.slane %v630, 1
    %v637 = vsel %vm35, %v635, %v636
    %v638 = vrot.slane %v631, 1
    %v639 = vsel %vm35, %v636, %v638
    %v643 = vmax.f32 %v629, %v637
    %v644 = vmax.f32 %v630, %v639
    %v645 = vmax.f32 %v631, %v638
    %v646 = vrot.slane %v629, 2
    %v647 = vrot.slane %v630, 2
    %v648 = vsel %vm55, %v646, %v647
    %v649 = vrot.slane %v631, 2
    %v650 = vsel %vm55, %v647, %v649
    %v654 = vmax.f32 %v643, %v648
    %v655 = vmax.f32 %v644, %v650
    %v656 = vmax.f32 %v645, %v649
    %v657 = vmax.f32 %v654, 0.0
    %v658 = vmax.f32 %v655, 0.0
    %v659 = vmax.f32 %v656, 0.0
    %v663 = vrot.slane %v657, 1
    %v664 = vrot.slane %v658, 1
    %v665 = vsel %vm35, %v663, %v664
    %v666 = vrot.slane %v659, 1
    %v667 = vsel %vm35, %v664, %v666
    %668 = vrot.lane.b32.xlu0 %v665, 16
    %v669 = vpop.permute.xlu0 %668
    %670 = vrot.lane.b32.xlu0 %v667, 16
    %v671 = vpop.permute.xlu0 %670
    %672 = vrot.lane.b32.xlu0 %v666, 16
    %v673 = vpop.permute.xlu0 %672
    %v677 = vrot.slane %v657, 2
    %v678 = vrot.slane %v658, 2
    %v679 = vsel %vm55, %v677, %v678
    %v680 = vrot.slane %v659, 2
    %v681 = vsel %vm55, %v678, %v680
    %682 = vrot.lane.b32.xlu0 %v679, 32
    %v683 = vpop.permute.xlu0 %682
    %684 = vrot.lane.b32.xlu0 %v681, 32
    %v685 = vpop.permute.xlu0 %684
    %686 = vrot.lane.b32.xlu0 %v680, 32
    %v687 = vpop.permute.xlu0 %686
    %v691 = vrot.slane %v657, 3
    %v692 = vrot.slane %v658, 3
    %v693 = vsel %vm67, %v691, %v692
    %v694 = vrot.slane %v659, 3
    %v695 = vsel %vm67, %v692, %v694
    %696 = vrot.lane.b32.xlu0 %v693, 48
    %v697 = vpop.permute.xlu0 %696
    %698 = vrot.lane.b32.xlu0 %v695, 48
    %v699 = vpop.permute.xlu0 %698
    %700 = vrot.lane.b32.xlu0 %v694, 48
    %v701 = vpop.permute.xlu0 %700
    %vm705 = vcmask 130048
    %v706 = vsel %vm705, %v657, %v669
    %v707 = vsel %vm705, %v658, %v671
    %v708 = vsel %vm705, %v659, %v673
    %v709 = vsel %vm479, %v706, %v683
    %v710 = vsel %vm479, %v707, %v685
    %v711 = vsel %vm479, %v708, %v687
    %vm712 = vcmask 392192
    %v713 = vsel %vm712, %v709, %v697
    %v714 = vsel %vm712, %v710, %v699
    %v715 = vsel %vm712, %v711, %v701
    %v716 = vld [vmem:[%s5] sm:$0xff]
    %v717 = vld [vmem:[%s5 + $0x8] sm:$0xff]
    %v718 = vld [vmem:[%s5 + $0x10] sm:$0xff]
    %v719 = vld [vmem:[%s5 + $0x18] sm:$0xff]
    %v720 = vld [vmem:[%s5 + $0x20] sm:$0xff]
    %v721 = vld [vmem:[%s5 + $0x28] sm:$0xff]
    %v722 = vld [vmem:[%s5 + $0x30] sm:$0xff]
    %v723 = vld [vmem:[%s5 + $0x38] sm:$0xff]
    %v724 = vld [vmem:[%s6] sm:$0x1]
    %v726 = vlaneseq
    %v727 = vshrl.u32 %v726, 7
    %v728 = vsub.s32 0, %v727
    %v729 = vrot.slane %v724, %v728
    %v732 = vsel %vm95, %v713, 0
    %v735 = vsel %vm95, %v714, 0
    %v738 = vsel %vm95, %v715, 0
    %740 = vmatprep.subr.mxu0 0.0
    %741 = vmatpush1.msra.mxu0 %v716
    %742 = vmatprep.subr.mxu0 0.0
    %743 = vmatpush1.msra.mxu0 %v717
    %744 = vmatprep.subr.mxu0 0.0
    %745 = vmatpush1.msra.mxu0 %v718
    %746 = vmatprep.subr.mxu0 0.0
    %747 = vmatpush1.msra.mxu0 %v719
    %748 = vmatprep.subr.mxu0 0.0
    %749 = vmatpush1.msra.mxu0 %v720
    %750 = vmatprep.subr.mxu0 0.0
    %751 = vmatpush1.msra.mxu0 %v721
    %752 = vmatprep.subr.mxu0 0.0
    %753 = vmatpush1.msra.mxu0 %v722
    %754 = vmatprep.subr.mxu0 0.0
    %755 = vmatpush1.msra.mxu0 %v723
    %756 = vmatprep.subr.mxu0 0.0
    %757 = vmatpush1.msra.mxu0 0.0
    %758 = vmatprep.subr.mxu0 0.0
    %759 = vmatpush1.msra.mxu0 0.0
    %760 = vmatprep.subr.mxu0 0.0
    %761 = vmatpush1.msra.mxu0 0.0
    %762 = vmatprep.subr.mxu0 0.0
    %763 = vmatpush1.msra.mxu0 0.0
    %764 = vmatprep.subr.mxu0 0.0
    %765 = vmatpush1.msra.mxu0 0.0
    %766 = vmatprep.subr.mxu0 0.0
    %767 = vmatpush1.msra.mxu0 0.0
    %768 = vmatprep.subr.mxu0 0.0
    %769 = vmatpush1.msra.mxu0 0.0
    %770 = vmatprep.subr.mxu0 0.0
    %771 = vmatpush1.msra.mxu0 0.0
    %772 = vmatprep.subr.mxu0 0.0
    %773 = vmatpush1.msra.mxu0 0.0
    %774 = vmatprep.subr.mxu0 0.0
    %775 = vmatpush1.msra.mxu0 0.0
    %776 = vmatprep.subr.mxu0 0.0
    %777 = vmatpush1.msra.mxu0 0.0
    %778 = vmatprep.subr.mxu0 0.0
    %779 = vmatpush1.msra.mxu0 0.0
    %780 = vmatprep.subr.mxu0 0.0
    %781 = vmatpush1.msra.mxu0 0.0
    %782 = vmatprep.subr.mxu0 0.0
    %783 = vmatpush1.msra.mxu0 0.0
    %784 = vmatprep.subr.mxu0 0.0
    %785 = vmatpush1.msra.mxu0 0.0
    %786 = vmatprep.subr.mxu0 0.0
    %787 = vmatpush1.msra.mxu0 0.0
    %788 = vmatprep.subr.mxu0 0.0
    %789 = vmatpush1.msra.mxu0 0.0
    %790 = vmatprep.subr.mxu0 0.0
    %791 = vmatpush1.msra.mxu0 0.0
    %792 = vmatprep.subr.mxu0 0.0
    %793 = vmatpush1.msra.mxu0 0.0
    %794 = vmatprep.subr.mxu0 0.0
    %795 = vmatpush1.msra.mxu0 0.0
    %796 = vmatprep.subr.mxu0 0.0
    %797 = vmatpush1.msra.mxu0 0.0
    %798 = vmatprep.subr.mxu0 0.0
    %799 = vmatpush1.msra.mxu0 0.0
    %800 = vmatprep.subr.mxu0 0.0
    %801 = vmatpush1.msra.mxu0 0.0
    %802 = vmatprep.subr.mxu0 0.0
    %803 = vmatpush1.msra.mxu0 0.0
    %804 = vmatprep.mubr.f32.mxu0 0.0
    %805 = vmatmul.mubr.f32.gmra.mrb[0].mxu0 %v732
    %v806 = vpop.f32.mrb[0].mxu0
    %v807 = vadd.f32 %v729, %v806
    %v808 = vpop.f32.mrb[0].mxu0
    %809 = vmatprep.mubr.f32.mxu0 0.0
    %810 = vmatmul.mubr.f32.gmra.mrb[0].mxu0 %v735
    %v811 = vpop.f32.mrb[0].mxu0
    %v812 = vpop.f32.mrb[0].mxu0
    %813 = vmatprep.mubr.f32.mxu0 0.0
    %814 = vmatmul.mubr.f32.gmra.mrb[0].mxu0 %v738
    %v815 = vpop.f32.mrb[0].mxu0
    %v816 = vadd.f32 %v729, %v815
    %v817 = vpop.f32.mrb[0].mxu0
    %818 = vdwg.mxu0
    %v820 = vrot.slane %v816, 7
    %vm822 = vcmask 1040384
    %v823 = vsel %vm822, %v807, %v820
    %vm824 = vcmask 58368
    %v825 = vsel %vm824, %v823, -inf
    %826 = vmax.xlane.f32.xlu0 %v825
    %v827 = vpop.xlane.xlu0 %826
    %v828 = vsub.f32 %v823, %v827
    %v829 = vmul.f32 %v828, 1.442695
    %v830 = vpow.pop %v829
    %v831 = vsel %vm824, %v830, 0.0
    %832 = vadd.xlane.f32.xlu0 %v831
    %v833 = vpop.xlane.xlu0 %832
    %v834 = vrcp.pop %v833
    %v835 = vmul.f32 %v830, %v834
    %836 = vst.msk [vmem:[#allocation2] sm:$0x3] %vm824, %v835
    // Predicated region
    $region30: #{tpu_custom_call.1} parent=1 // pred_check
      _
    $region31: #{tpu_custom_call.1} parent=1 // pred_check_branch
      %838 = sbr.rel (0) target = $region33
    $region32: #{tpu_custom_call.1} parent=1 // pred_region
      %s840 = ssub.s32 32, 32
      %841 = vsyncadd [#allocation3], %s840
      %s843 = sshll.u32 [#allocation2], 4
      %s844 = int_to_ptr.vmem [resolvable:$true] %s843
      %846 = dma.vmem_to_hbm [thread:$0]  %s844, 32, %s7, [#allocation3]
    $region33: #{tpu_custom_call.1} parent=1 // pred_fallthru
      _
    // Predicated region
    $region34: #{tpu_custom_call.1} parent=1 // pred_check
      _
    $region35: #{tpu_custom_call.1} parent=1 // pred_check_branch
      %848 = sbr.rel (0) target = $region37
    $region36: #{tpu_custom_call.1} parent=1 // pred_region
      %849 = dma.done [#allocation3], 32
    $region37: #{tpu_custom_call.1} parent=1 // pred_fallthru
      _
    %850 = vsyncpa [#allocation3], 1

</llo_original>
